<compile_context>
chip_gen: v6e
topology: v6e:2x2x1
jax: 0.10.0
libtpu: 0.0.40
codegen_flags: <defaults>
</compile_context>

<pallas_src>
import functools

import jax
import jax.numpy as jnp
from jax.experimental import pallas as pl
from jax.experimental.pallas import tpu as pltpu

# SELU constants (match torch.nn.functional.selu)
_SELU_ALPHA = 1.6732632423543772
_SELU_SCALE = 1.0507009873554805

_PAD = 128          # lane-padded width for hidden / output dims
_HIDDEN = (64, 128, 64)


def _round_up(n, m):
    return ((n + m - 1) // m) * m


def _selu(x):
    # exp runs on the EUP slot, essentially free under the MXU/DMA.
    return _SELU_SCALE * jnp.where(x > 0, x, _SELU_ALPHA * (jnp.exp(x) - 1.0))


def _mlp_kernel(input_dim, x_ref, w_ref, b_ref, o_ref, xs_ref):
    # x_ref: (TB, input_dim) f32   w_ref: (4, 128, 128) bf16
    # b_ref: (4, 1, 128) f32       o_ref: (TB, 128) bf16
    # xs_ref: (TB, 128) f32 scratch
    #
    # Zero-extend the narrow input tile to a lane-dense (TB, 128) slab.
    # Padded lanes must be exact zeros (padded weight rows then contribute 0).
    xs_ref[...] = jnp.zeros_like(xs_ref)
    xs_ref[:, :input_dim] = x_ref[...]
    h = xs_ref[...].astype(jnp.bfloat16)

    for layer in range(3):
        z = jnp.dot(h, w_ref[layer], preferred_element_type=jnp.float32)
        z = z + b_ref[layer]                      # f32 bias, f32 accumulate
        h = _selu(z).astype(jnp.bfloat16)         # dropout1..3: identity (eval)

    out = jnp.dot(h, w_ref[3], preferred_element_type=jnp.float32) + b_ref[3]
    o_ref[...] = out.astype(jnp.bfloat16)         # lane-dense 128-wide bf16 store


def _pick_batch_tile(B):
    """Batch tile: big tiles to amortize ~0.35us/step overhead, but at least
    two grid steps when B > 128 so v7x's two TensorCores both get work."""
    n128 = max(1, _round_up(B, 128) // 128)       # number of 128-row tiles
    if n128 <= 1:
        return 128
    return 128 * min(16, (n128 + 1) // 2)          # cap at 2048 rows


@jax.jit
def crop_recommendation_net(x, w_packed, b_packed):
    """Forward pass.

    x: [B, input_dim] f32 (unpadded).
    Returns lane-padded logits [B, 128] bf16; lanes >= output_dim are exact
    zeros — slice [:, :out_dim] in the consumer (fuses downstream).
    """
    B, input_dim = x.shape
    n_layers, P, _ = w_packed.shape

    TB = _pick_batch_tile(B)

    return pl.pallas_call(
        functools.partial(_mlp_kernel, input_dim),
        out_shape=jax.ShapeDtypeStruct((B, P), jnp.bfloat16),
        grid=(pl.cdiv(B, TB),),
        in_specs=[
            pl.BlockSpec((TB, input_dim), lambda i: (i, 0)),       # x tile (narrow)
            pl.BlockSpec((n_layers, P, P), lambda i: (0, 0, 0)),   # weights (resident)
            pl.BlockSpec((n_layers, 1, P), lambda i: (0, 0, 0)),   # biases  (resident)
        ],
        out_specs=pl.BlockSpec((TB, P), lambda i: (i, 0)),
        scratch_shapes=[pltpu.VMEM((TB, P), jnp.float32)],
        compiler_params=pltpu.CompilerParams(
            dimension_semantics=("parallel",)),
    )(x, w_packed, b_packed)


def init_params(key, input_dim, output_dim):
    """Unpacked f32 params with the same shapes/init range as torch nn.Linear
    (weights stored transposed as [in, out] so the kernel does x @ W)."""
    dims = [(input_dim, _HIDDEN[0]), (_HIDDEN[0], _HIDDEN[1]),
            (_HIDDEN[1], _HIDDEN[2]), (_HIDDEN[2], output_dim)]
    params = {}
    for idx, (d_in, d_out) in enumerate(dims, start=1):
        key, wk, bk = jax.random.split(key, 3)
        bound = 1.0 / jnp.sqrt(d_in)
        params[f"w{idx}"] = jax.random.uniform(
            wk, (d_in, d_out), jnp.float32, -bound, bound)
        params[f"b{idx}"] = jax.random.uniform(
            bk, (1, d_out), jnp.float32, -bound, bound)
    return params


def pack_params(params, input_dim, output_dim, p=_PAD, w_dtype=jnp.bfloat16):
    """Pack the 4 layers into one zero-padded bf16 weight slab + f32 bias slab.
    Done once at setup time, outside the hot path."""
    dims = [(input_dim, _HIDDEN[0]), (_HIDDEN[0], _HIDDEN[1]),
            (_HIDDEN[1], _HIDDEN[2]), (_HIDDEN[2], output_dim)]
    assert all(d_in <= p and d_out <= p for d_in, d_out in dims)
    w_packed = jnp.zeros((4, p, p), jnp.float32)
    b_packed = jnp.zeros((4, 1, p), jnp.float32)
    for i, (d_in, d_out) in enumerate(dims):
        w_packed = w_packed.at[i, :d_in, :d_out].set(params[f"w{i + 1}"])
        b_packed = b_packed.at[i, :, :d_out].set(params[f"b{i + 1}"])
    return w_packed.astype(w_dtype), b_packed


def reference_forward(x, params):
    """Pure-JAX reference mirroring the kernel's numerics
    (bf16 inputs to each dot, f32 accumulation, f32 SELU/bias)."""
    h = x.astype(jnp.bfloat16)
    for idx in range(1, 4):
        w = params[f"w{idx}"].astype(jnp.bfloat16)
        z = jnp.dot(h, w, preferred_element_type=jnp.float32) + params[f"b{idx}"]
        h = _selu(z).astype(jnp.bfloat16)
    w4 = params["w4"].astype(jnp.bfloat16)
    return jnp.dot(h, w4, preferred_element_type=jnp.float32) + params["b4"]


if __name__ == "__main__":
    INPUT_DIM = 7     # N, P, K, temperature, humidity, pH, rainfall
    OUTPUT_DIM = 22   # crop classes
    BATCH = 8

    key = jax.random.PRNGKey(0)
    key, xk = jax.random.split(key)
    x = jax.random.normal(xk, (BATCH, INPUT_DIM), jnp.float32)

    params = init_params(jax.random.PRNGKey(0), INPUT_DIM, OUTPUT_DIM)
    w_packed, b_packed = pack_params(params, INPUT_DIM, OUTPUT_DIM)

    out_padded = crop_recommendation_net(x, w_packed, b_packed)
    out_padded = jax.block_until_ready(out_padded)
    assert out_padded.shape == (BATCH, _PAD), out_padded.shape

    # Padded lanes must be exact zeros (zero-padded weights/biases).
    assert bool(jnp.all(out_padded[:, OUTPUT_DIM:] == 0))

    logits = out_padded[:, :OUTPUT_DIM].astype(jnp.float32)
    ref = reference_forward(x, params)
    assert logits.shape == (BATCH, OUTPUT_DIM), logits.shape
    max_err = float(jnp.max(jnp.abs(logits - ref)))
    # Kernel additionally rounds the output to bf16 -> modest tolerance.
    assert jnp.allclose(logits, ref, atol=1e-2, rtol=1e-2), f"max err {max_err}"

    print("KERNEL_OK")
</pallas_src>

<mosaic_0001>
module attributes {stable_mosaic.version = 11 : i64} {
  func.func @_mlp_kernel(%arg0: i32, %arg1: memref<128x7xf32, #tpu.memory_space<vmem>>, %arg2: memref<4x128x128xbf16, #tpu.memory_space<vmem>>, %arg3: memref<4x1x128xf32, #tpu.memory_space<vmem>>, %arg4: memref<128x128xbf16, #tpu.memory_space<vmem>>, %arg5: memref<128x128xf32, #tpu.memory_space<vmem>>) attributes {dimension_semantics = [#tpu.dimension_semantics<parallel>], iteration_bounds = array<i64: 1>, scalar_prefetch = 0 : i64, scratch_operands = 1 : i64, tpu.core_type = #tpu.core_type<tc>, window_params = [{transform_indices = @transform_0, window_bounds = array<i64: 128, 7>}, {pipeline_mode = #tpu.pipeline_mode<synchronous>, transform_indices = @transform_1, window_bounds = array<i64: 4, 128, 128>}, {pipeline_mode = #tpu.pipeline_mode<synchronous>, transform_indices = @transform_2, window_bounds = array<i64: 4, 1, 128>}, {transform_indices = @transform_3, window_bounds = array<i64: 128, 128>}]} {
    %cst = arith.constant 0.000000e+00 : f32
    %0 = vector.broadcast %cst : f32 to vector<128x128xf32>
    %c0 = arith.constant 0 : index
    %c0_0 = arith.constant 0 : index
    %1 = vector.load %arg5[%c0, %c0_0] : memref<128x128xf32, #tpu.memory_space<vmem>>, vector<128x128xf32>
    tpu.vector_store %arg5[%c0, %c0_0], %0 {strides = array<i32>} : memref<128x128xf32, #tpu.memory_space<vmem>>, vector<128x128xf32>,
    %c0_1 = arith.constant 0 : index
    %c0_2 = arith.constant 0 : index
    %2 = vector.load %arg1[%c0_1, %c0_2] : memref<128x7xf32, #tpu.memory_space<vmem>>, vector<128x7xf32>
    %c0_3 = arith.constant 0 : index
    %c0_4 = arith.constant 0 : index
    %3 = vector.load %arg5[%c0_3, %c0_4] : memref<128x128xf32, #tpu.memory_space<vmem>>, vector<128x7xf32>
    tpu.vector_store %arg5[%c0_3, %c0_4], %2 {strides = array<i32>} : memref<128x128xf32, #tpu.memory_space<vmem>>, vector<128x7xf32>,
    %c0_5 = arith.constant 0 : index
    %c0_6 = arith.constant 0 : index
    %4 = vector.load %arg5[%c0_5, %c0_6] : memref<128x128xf32, #tpu.memory_space<vmem>>, vector<128x128xf32>
    %5 = arith.truncf %4 : vector<128x128xf32> to vector<128x128xbf16>
    %c0_7 = arith.constant 0 : index
    %c0_8 = arith.constant 0 : index
    %c0_9 = arith.constant 0 : index
    %6 = vector.load %arg2[%c0_7, %c0_8, %c0_9] : memref<4x128x128xbf16, #tpu.memory_space<vmem>>, vector<1x128x128xbf16>
    %7 = vector.shape_cast %6 : vector<1x128x128xbf16> to vector<128x128xbf16>
    %cst_10 = arith.constant dense<0.000000e+00> : vector<128x128xf32>
    %8 = tpu.matmul %5, %7, %cst_10 {dimension_numbers = #tpu.dot_dimension_numbers<[1], [0], [0], [1], [0, 0, 1, 1], [], []>} : vector<128x128xbf16>, vector<128x128xbf16>, vector<128x128xf32> -> vector<128x128xf32>
    %c0_11 = arith.constant 0 : index
    %c0_12 = arith.constant 0 : index
    %c0_13 = arith.constant 0 : index
    %9 = vector.load %arg3[%c0_11, %c0_12, %c0_13] : memref<4x1x128xf32, #tpu.memory_space<vmem>>, vector<1x1x128xf32>
    %10 = vector.shape_cast %9 : vector<1x1x128xf32> to vector<1x128xf32>
    %11 = vector.broadcast %10 : vector<1x128xf32> to vector<128x128xf32>
    %12 = arith.addf %8, %11 : vector<128x128xf32>
    %cst_14 = arith.constant 0.000000e+00 : f32
    %13 = vector.broadcast %cst_14 : f32 to vector<128x128xf32>
    %14 = arith.cmpf ogt, %12, %13 : vector<128x128xf32>
    %15 = math.exp %12 : vector<128x128xf32>
    %cst_15 = arith.constant 1.000000e+00 : f32
    %16 = vector.broadcast %cst_15 : f32 to vector<128x128xf32>
    %17 = arith.subf %15, %16 : vector<128x128xf32>
    %cst_16 = arith.constant 1.67326319 : f32
    %18 = vector.broadcast %cst_16 : f32 to vector<128x128xf32>
    %19 = arith.mulf %18, %17 : vector<128x128xf32>
    %20 = arith.select %14, %12, %19 : vector<128x128xi1>, vector<128x128xf32>
    %cst_17 = arith.constant 1.05070102 : f32
    %21 = vector.broadcast %cst_17 : f32 to vector<128x128xf32>
    %22 = arith.mulf %21, %20 : vector<128x128xf32>
    %23 = arith.truncf %22 : vector<128x128xf32> to vector<128x128xbf16>
    %c1 = arith.constant 1 : index
    %c0_18 = arith.constant 0 : index
    %c0_19 = arith.constant 0 : index
    %24 = vector.load %arg2[%c1, %c0_18, %c0_19] : memref<4x128x128xbf16, #tpu.memory_space<vmem>>, vector<1x128x128xbf16>
    %25 = vector.shape_cast %24 : vector<1x128x128xbf16> to vector<128x128xbf16>
    %cst_20 = arith.constant dense<0.000000e+00> : vector<128x128xf32>
    %26 = tpu.matmul %23, %25, %cst_20 {dimension_numbers = #tpu.dot_dimension_numbers<[1], [0], [0], [1], [0, 0, 1, 1], [], []>} : vector<128x128xbf16>, vector<128x128xbf16>, vector<128x128xf32> -> vector<128x128xf32>
    %c1_21 = arith.constant 1 : index
    %c0_22 = arith.constant 0 : index
    %c0_23 = arith.constant 0 : index
    %27 = vector.load %arg3[%c1_21, %c0_22, %c0_23] : memref<4x1x128xf32, #tpu.memory_space<vmem>>, vector<1x1x128xf32>
    %28 = vector.shape_cast %27 : vector<1x1x128xf32> to vector<1x128xf32>
    %29 = vector.broadcast %28 : vector<1x128xf32> to vector<128x128xf32>
    %30 = arith.addf %26, %29 : vector<128x128xf32>
    %cst_24 = arith.constant 0.000000e+00 : f32
    %31 = vector.broadcast %cst_24 : f32 to vector<128x128xf32>
    %32 = arith.cmpf ogt, %30, %31 : vector<128x128xf32>
    %33 = math.exp %30 : vector<128x128xf32>
    %cst_25 = arith.constant 1.000000e+00 : f32
    %34 = vector.broadcast %cst_25 : f32 to vector<128x128xf32>
    %35 = arith.subf %33, %34 : vector<128x128xf32>
    %cst_26 = arith.constant 1.67326319 : f32
    %36 = vector.broadcast %cst_26 : f32 to vector<128x128xf32>
    %37 = arith.mulf %36, %35 : vector<128x128xf32>
    %38 = arith.select %32, %30, %37 : vector<128x128xi1>, vector<128x128xf32>
    %cst_27 = arith.constant 1.05070102 : f32
    %39 = vector.broadcast %cst_27 : f32 to vector<128x128xf32>
    %40 = arith.mulf %39, %38 : vector<128x128xf32>
    %41 = arith.truncf %40 : vector<128x128xf32> to vector<128x128xbf16>
    %c2 = arith.constant 2 : index
    %c0_28 = arith.constant 0 : index
    %c0_29 = arith.constant 0 : index
    %42 = vector.load %arg2[%c2, %c0_28, %c0_29] : memref<4x128x128xbf16, #tpu.memory_space<vmem>>, vector<1x128x128xbf16>
    %43 = vector.shape_cast %42 : vector<1x128x128xbf16> to vector<128x128xbf16>
    %cst_30 = arith.constant dense<0.000000e+00> : vector<128x128xf32>
    %44 = tpu.matmul %41, %43, %cst_30 {dimension_numbers = #tpu.dot_dimension_numbers<[1], [0], [0], [1], [0, 0, 1, 1], [], []>} : vector<128x128xbf16>, vector<128x128xbf16>, vector<128x128xf32> -> vector<128x128xf32>
    %c2_31 = arith.constant 2 : index
    %c0_32 = arith.constant 0 : index
    %c0_33 = arith.constant 0 : index
    %45 = vector.load %arg3[%c2_31, %c0_32, %c0_33] : memref<4x1x128xf32, #tpu.memory_space<vmem>>, vector<1x1x128xf32>
    %46 = vector.shape_cast %45 : vector<1x1x128xf32> to vector<1x128xf32>
    %47 = vector.broadcast %46 : vector<1x128xf32> to vector<128x128xf32>
    %48 = arith.addf %44, %47 : vector<128x128xf32>
    %cst_34 = arith.constant 0.000000e+00 : f32
    %49 = vector.broadcast %cst_34 : f32 to vector<128x128xf32>
    %50 = arith.cmpf ogt, %48, %49 : vector<128x128xf32>
    %51 = math.exp %48 : vector<128x128xf32>
    %cst_35 = arith.constant 1.000000e+00 : f32
    %52 = vector.broadcast %cst_35 : f32 to vector<128x128xf32>
    %53 = arith.subf %51, %52 : vector<128x128xf32>
    %cst_36 = arith.constant 1.67326319 : f32
    %54 = vector.broadcast %cst_36 : f32 to vector<128x128xf32>
    %55 = arith.mulf %54, %53 : vector<128x128xf32>
    %56 = arith.select %50, %48, %55 : vector<128x128xi1>, vector<128x128xf32>
    %cst_37 = arith.constant 1.05070102 : f32
    %57 = vector.broadcast %cst_37 : f32 to vector<128x128xf32>
    %58 = arith.mulf %57, %56 : vector<128x128xf32>
    %59 = arith.truncf %58 : vector<128x128xf32> to vector<128x128xbf16>
    %c3 = arith.constant 3 : index
    %c0_38 = arith.constant 0 : index
    %c0_39 = arith.constant 0 : index
    %60 = vector.load %arg2[%c3, %c0_38, %c0_39] : memref<4x128x128xbf16, #tpu.memory_space<vmem>>, vector<1x128x128xbf16>
    %61 = vector.shape_cast %60 : vector<1x128x128xbf16> to vector<128x128xbf16>
    %cst_40 = arith.constant dense<0.000000e+00> : vector<128x128xf32>
    %62 = tpu.matmul %59, %61, %cst_40 {dimension_numbers = #tpu.dot_dimension_numbers<[1], [0], [0], [1], [0, 0, 1, 1], [], []>} : vector<128x128xbf16>, vector<128x128xbf16>, vector<128x128xf32> -> vector<128x128xf32>
    %c3_41 = arith.constant 3 : index
    %c0_42 = arith.constant 0 : index
    %c0_43 = arith.constant 0 : index
    %63 = vector.load %arg3[%c3_41, %c0_42, %c0_43] : memref<4x1x128xf32, #tpu.memory_space<vmem>>, vector<1x1x128xf32>
    %64 = vector.shape_cast %63 : vector<1x1x128xf32> to vector<1x128xf32>
    %65 = vector.broadcast %64 : vector<1x128xf32> to vector<128x128xf32>
    %66 = arith.addf %62, %65 : vector<128x128xf32>
    %67 = arith.truncf %66 : vector<128x128xf32> to vector<128x128xbf16>
    %c0_44 = arith.constant 0 : index
    %c0_45 = arith.constant 0 : index
    %68 = vector.load %arg4[%c0_44, %c0_45] : memref<128x128xbf16, #tpu.memory_space<vmem>>, vector<128x128xbf16>
    tpu.vector_store %arg4[%c0_44, %c0_45], %67 {strides = array<i32>} : memref<128x128xbf16, #tpu.memory_space<vmem>>, vector<128x128xbf16>,
    return
  }
  func.func @transform_0(%arg0: i32) -> (i32, i32) {
    %c0_i32 = arith.constant 0 : i32
    %c0_i32_0 = arith.constant 0 : i32
    return %arg0, %c0_i32 : i32, i32
  }
  func.func @transform_1(%arg0: i32) -> (i32, i32, i32) {
    %c0_i32 = arith.constant 0 : i32
    %c0_i32_0 = arith.constant 0 : i32
    %c0_i32_1 = arith.constant 0 : i32
    %c0_i32_2 = arith.constant 0 : i32
    return %c0_i32, %c0_i32_0, %c0_i32_1 : i32, i32, i32
  }
  func.func @transform_2(%arg0: i32) -> (i32, i32, i32) {
    %c0_i32 = arith.constant 0 : i32
    %c0_i32_0 = arith.constant 0 : i32
    %c0_i32_1 = arith.constant 0 : i32
    %c0_i32_2 = arith.constant 0 : i32
    return %c0_i32, %c0_i32_0, %c0_i32_1 : i32, i32, i32
  }
  func.func @transform_3(%arg0: i32) -> (i32, i32) {
    %c0_i32 = arith.constant 0 : i32
    %c0_i32_0 = arith.constant 0 : i32
    return %arg0, %c0_i32 : i32, i32
  }
}

</mosaic_0001>

<llo_original>
// kernel: crop_recommendation_net.1
$region0: #{crop_recommendation_net.1}
  #allocation0 [shape = 'u32[]', space=smem, size = 0x4, offset = 0x4, fixed_abs, tag = 'smem constant byte address 0x4 - core index']
  #allocation1 [shape = 'u32[144,128]{1,0:T(1,128)}', space=vmem, size = 0x12000, scoped, tag = 'internal scratch']
  #allocation2 [shape = 'f32[128,128]{1,0:T(8,128)}', space=vmem, size = 0x10000, scoped, tag = 'scratch operand']
  %s0 = inlined_call_operand.hbm [shape: f32[8,7], index: 0, kind: input, shape index: {}]
  %s1 = inlined_call_operand.hbm [shape: bf16[4,128,128], index: 1, kind: input, shape index: {}]
  %s2 = inlined_call_operand.hbm [shape: f32[4,1,128], index: 2, kind: input, shape index: {}]
  %s3 = inlined_call_operand.hbm [shape: bf16[8,128], index: 3, kind: output, shape index: {}]
  %s4 = sld [smem:[#allocation0]]
  $region34: #{crop_recommendation_net.1} parent=0
    _
  %s6 = ssub.s32 1, %s4
  %s7 = scalar_select 0, %s6, %s4
  $region1: #{crop_recommendation_net.1} parent=0
    #allocation3 [shape = 'u8[65536]{0}', space=vmem, size = 0x10000, scoped, tag = 'input window, operand 0, single buffered']
    #allocation4 [shape = 's32[1]{0}', space=sflag, size = 0x4, scoped, tag = 'scoped memory for crop_recommendation_net.1']
    #allocation5 [shape = 's32[1]{0}', space=sflag, size = 0x4, scoped, tag = 'scoped memory for crop_recommendation_net.1']
    #allocation6 [shape = 'u8[131072]{0}', space=vmem, size = 0x20000, scoped, tag = 'input window, operand 1, single buffered']
    #allocation7 [shape = 's32[1]{0}', space=sflag, size = 0x4, scoped, tag = 'scoped memory for crop_recommendation_net.1']
    #allocation8 [shape = 'u8[2048]{0}', space=vmem, size = 0x800, scoped, tag = 'input window, operand 2, single buffered']
    #allocation9 [shape = 'u8[32768]{0}', space=vmem, size = 0x8000, scoped, tag = 'output window, operand 0, single buffered']
    %8 = vsyncpa [#allocation4], 0
    %9 = vsyncpa [#allocation7], 0
    %10 = vsyncpa [#allocation5], 0
    // Predicated region
    $region2: #{crop_recommendation_net.1} parent=1 // pred_check
      _
    $region3: #{crop_recommendation_net.1} parent=1 // pred_check_branch
      %12 = sbr.rel (0) target = $region5
    $region4: #{crop_recommendation_net.1} parent=1 // pred_region
      %s14 = ssub.s32 2048, 128
      %15 = vsyncadd [#allocation4], %s14
      %s16 = sshll.u32 [#allocation3], 4
      %s17 = int_to_ptr.vmem [resolvable:$true] %s16
      %22 = dma.hbm_to_vmem [thread:$0]  %s0, 128, %s17, [#allocation4], 128, 128, 8
    $region5: #{crop_recommendation_net.1} parent=1 // pred_fallthru
      _
    // Predicated region
    $region6: #{crop_recommendation_net.1} parent=1 // pred_check
      _
    $region7: #{crop_recommendation_net.1} parent=1 // pred_check_branch
      %24 = sbr.rel (0) target = $region9
    $region8: #{crop_recommendation_net.1} parent=1 // pred_region
      %s26 = ssub.s32 4096, 4096
      %27 = vsyncadd [#allocation7], %s26
      %s28 = sshll.u32 [#allocation6], 4
      %s29 = int_to_ptr.vmem [resolvable:$true] %s28
      %34 = dma.hbm_to_vmem [thread:$0]  %s1, 4096, %s29, [#allocation7], 64, 64, 4
    $region9: #{crop_recommendation_net.1} parent=1 // pred_fallthru
      _
    // Predicated region
    $region10: #{crop_recommendation_net.1} parent=1 // pred_check
      _
    $region11: #{crop_recommendation_net.1} parent=1 // pred_check_branch
      %36 = sbr.rel (0) target = $region13
    $region12: #{crop_recommendation_net.1} parent=1 // pred_region
      %s38 = ssub.s32 64, 64
      %39 = vsyncadd [#allocation7], %s38
      %s40 = sshll.u32 [#allocation8], 4
      %s41 = int_to_ptr.vmem [resolvable:$true] %s40
      %46 = dma.hbm_to_vmem [thread:$0]  %s2, 64, %s41, [#allocation7], 16, 16, 1
    $region13: #{crop_recommendation_net.1} parent=1 // pred_fallthru
      _
    // Predicated region
    $region14: #{crop_recommendation_net.1} parent=1 // pred_check
      _
    $region15: #{crop_recommendation_net.1} parent=1 // pred_check_branch
      %48 = sbr.rel (0) target = $region17
    $region16: #{crop_recommendation_net.1} parent=1 // pred_region
      %49 = dma.done [#allocation4], 2048
    $region17: #{crop_recommendation_net.1} parent=1 // pred_fallthru
      _
    // Predicated region
    $region18: #{crop_recommendation_net.1} parent=1 // pred_check
      _
    $region19: #{crop_recommendation_net.1} parent=1 // pred_check_branch
      %51 = sbr.rel (0) target = $region21
    $region20: #{crop_recommendation_net.1} parent=1 // pred_region
      %52 = dma.done [#allocation7], 4096
    $region21: #{crop_recommendation_net.1} parent=1 // pred_fallthru
      _
    // Predicated region
    $region22: #{crop_recommendation_net.1} parent=1 // pred_check
      _
    $region23: #{crop_recommendation_net.1} parent=1 // pred_check_branch
      %54 = sbr.rel (0) target = $region25
    $region24: #{crop_recommendation_net.1} parent=1 // pred_region
      %55 = dma.done [#allocation7], 64
    $region25: #{crop_recommendation_net.1} parent=1 // pred_fallthru
      _
    %57 = vst [vmem:[#allocation2] sm:$0xff] 0.0
    %58 = vst [vmem:[#allocation2 + $0x8] sm:$0xff] 0.0
    %59 = vst [vmem:[#allocation2 + $0x10] sm:$0xff] 0.0
    %60 = vst [vmem:[#allocation2 + $0x18] sm:$0xff] 0.0
    %61 = vst [vmem:[#allocation2 + $0x20] sm:$0xff] 0.0
    %62 = vst [vmem:[#allocation2 + $0x28] sm:$0xff] 0.0
    %63 = vst [vmem:[#allocation2 + $0x30] sm:$0xff] 0.0
    %64 = vst [vmem:[#allocation2 + $0x38] sm:$0xff] 0.0
    %65 = vst [vmem:[#allocation2 + $0x40] sm:$0xff] 0.0
    %66 = vst [vmem:[#allocation2 + $0x48] sm:$0xff] 0.0
    %67 = vst [vmem:[#allocation2 + $0x50] sm:$0xff] 0.0
    %68 = vst [vmem:[#allocation2 + $0x58] sm:$0xff] 0.0
    %69 = vst [vmem:[#allocation2 + $0x60] sm:$0xff] 0.0
    %70 = vst [vmem:[#allocation2 + $0x68] sm:$0xff] 0.0
    %71 = vst [vmem:[#allocation2 + $0x70] sm:$0xff] 0.0
    %72 = vst [vmem:[#allocation2 + $0x78] sm:$0xff] 0.0
    %v73 = vld [vmem:[#allocation3] sm:$0xff]
    %v74 = vld [vmem:[#allocation3 + $0x8] sm:$0xff]
    %v75 = vld [vmem:[#allocation3 + $0x10] sm:$0xff]
    %v76 = vld [vmem:[#allocation3 + $0x18] sm:$0xff]
    %v77 = vld [vmem:[#allocation3 + $0x20] sm:$0xff]
    %v78 = vld [vmem:[#allocation3 + $0x28] sm:$0xff]
    %v79 = vld [vmem:[#allocation3 + $0x30] sm:$0xff]
    %v80 = vld [vmem:[#allocation3 + $0x38] sm:$0xff]
    %v81 = vld [vmem:[#allocation3 + $0x40] sm:$0xff]
    %v82 = vld [vmem:[#allocation3 + $0x48] sm:$0xff]
    %v83 = vld [vmem:[#allocation3 + $0x50] sm:$0xff]
    %v84 = vld [vmem:[#allocation3 + $0x58] sm:$0xff]
    %v85 = vld [vmem:[#allocation3 + $0x60] sm:$0xff]
    %v86 = vld [vmem:[#allocation3 + $0x68] sm:$0xff]
    %v87 = vld [vmem:[#allocation3 + $0x70] sm:$0xff]
    %v88 = vld [vmem:[#allocation3 + $0x78] sm:$0xff]
    %vm89 = vcmask 56320
    %90 = vst.msk [vmem:[#allocation2] sm:$0xff] %vm89, %v73
    %91 = vst.msk [vmem:[#allocation2 + $0x8] sm:$0xff] %vm89, %v74
    %92 = vst.msk [vmem:[#allocation2 + $0x10] sm:$0xff] %vm89, %v75
    %93 = vst.msk [vmem:[#allocation2 + $0x18] sm:$0xff] %vm89, %v76
    %94 = vst.msk [vmem:[#allocation2 + $0x20] sm:$0xff] %vm89, %v77
    %95 = vst.msk [vmem:[#allocation2 + $0x28] sm:$0xff] %vm89, %v78
    %96 = vst.msk [vmem:[#allocation2 + $0x30] sm:$0xff] %vm89, %v79
    %97 = vst.msk [vmem:[#allocation2 + $0x38] sm:$0xff] %vm89, %v80
    %98 = vst.msk [vmem:[#allocation2 + $0x40] sm:$0xff] %vm89, %v81
    %99 = vst.msk [vmem:[#allocation2 + $0x48] sm:$0xff] %vm89, %v82
    %100 = vst.msk [vmem:[#allocation2 + $0x50] sm:$0xff] %vm89, %v83
    %101 = vst.msk [vmem:[#allocation2 + $0x58] sm:$0xff] %vm89, %v84
    %102 = vst.msk [vmem:[#allocation2 + $0x60] sm:$0xff] %vm89, %v85
    %103 = vst.msk [vmem:[#allocation2 + $0x68] sm:$0xff] %vm89, %v86
    %104 = vst.msk [vmem:[#allocation2 + $0x70] sm:$0xff] %vm89, %v87
    %105 = vst.msk [vmem:[#allocation2 + $0x78] sm:$0xff] %vm89, %v88
    %v106 = vld [vmem:[#allocation2] sm:$0xff]
    %v107 = vld [vmem:[#allocation2 + $0x8] sm:$0xff]
    %v108 = vld [vmem:[#allocation2 + $0x10] sm:$0xff]
    %v109 = vld [vmem:[#allocation2 + $0x18] sm:$0xff]
    %v110 = vld [vmem:[#allocation2 + $0x20] sm:$0xff]
    %v111 = vld [vmem:[#allocation2 + $0x28] sm:$0xff]
    %v112 = vld [vmem:[#allocation2 + $0x30] sm:$0xff]
    %v113 = vld [vmem:[#allocation2 + $0x38] sm:$0xff]
    %v114 = vld [vmem:[#allocation2 + $0x40] sm:$0xff]
    %v115 = vld [vmem:[#allocation2 + $0x48] sm:$0xff]
    %v116 = vld [vmem:[#allocation2 + $0x50] sm:$0xff]
    %v117 = vld [vmem:[#allocation2 + $0x58] sm:$0xff]
    %v118 = vld [vmem:[#allocation2 + $0x60] sm:$0xff]
    %v119 = vld [vmem:[#allocation2 + $0x68] sm:$0xff]
    %v120 = vld [vmem:[#allocation2 + $0x70] sm:$0xff]
    %v121 = vld [vmem:[#allocation2 + $0x78] sm:$0xff]
    %v122 = vpack.c.bf16 %v107, %v106
    %v123 = vpack.c.bf16 %v109, %v108
    %v124 = vpack.c.bf16 %v111, %v110
    %v125 = vpack.c.bf16 %v113, %v112
    %v126 = vpack.c.bf16 %v115, %v114
    %v127 = vpack.c.bf16 %v117, %v116
    %v128 = vpack.c.bf16 %v119, %v118
    %v129 = vpack.c.bf16 %v121, %v120
    %v130 = vld [vmem:[#allocation6] sm:$0xf]
    %v131 = vld [vmem:[#allocation6 + $0x4] sm:$0xf]
    %v132 = vld [vmem:[#allocation6 + $0x8] sm:$0xf]
    %v133 = vld [vmem:[#allocation6 + $0xc] sm:$0xf]
    %v134 = vld [vmem:[#allocation6 + $0x10] sm:$0xf]
    %v135 = vld [vmem:[#allocation6 + $0x14] sm:$0xf]
    %v136 = vld [vmem:[#allocation6 + $0x18] sm:$0xf]
    %v137 = vld [vmem:[#allocation6 + $0x1c] sm:$0xf]
    %v138 = vld [vmem:[#allocation6 + $0x20] sm:$0xf]
    %v139 = vld [vmem:[#allocation6 + $0x24] sm:$0xf]
    %v140 = vld [vmem:[#allocation6 + $0x28] sm:$0xf]
    %v141 = vld [vmem:[#allocation6 + $0x2c] sm:$0xf]
    %v142 = vld [vmem:[#allocation6 + $0x30] sm:$0xf]
    %v143 = vld [vmem:[#allocation6 + $0x34] sm:$0xf]
    %v144 = vld [vmem:[#allocation6 + $0x38] sm:$0xf]
    %v145 = vld [vmem:[#allocation6 + $0x3c] sm:$0xf]
    %v146 = vld [vmem:[#allocation8] sm:$0x1]
    %v148 = vlaneseq
    %v149 = vshrl.u32 %v148, 7
    %v150 = vsub.s32 0, %v149
    %v151 = vrot.slane %v146, %v150
    %v169 = vunpack.c.l.b16 %v130
    %v170 = vunpack.c.l.b16 %v131
    %v171 = vunpack.c.l.b16 %v132
    %v172 = vunpack.c.l.b16 %v133
    %v173 = vunpack.c.l.b16 %v134
    %v174 = vunpack.c.l.b16 %v135
    %v175 = vunpack.c.l.b16 %v136
    %v176 = vunpack.c.l.b16 %v137
    %v177 = vunpack.c.l.b16 %v138
    %v178 = vunpack.c.l.b16 %v139
    %v179 = vunpack.c.l.b16 %v140
    %v180 = vunpack.c.l.b16 %v141
    %v181 = vunpack.c.l.b16 %v142
    %v182 = vunpack.c.l.b16 %v143
    %v183 = vunpack.c.l.b16 %v144
    %v184 = vunpack.c.l.b16 %v145
    %v185 = vpack.c.b16 %v170, %v169
    %v186 = vpack.c.b16 %v172, %v171
    %v187 = vpack.c.b16 %v174, %v173
    %v188 = vpack.c.b16 %v176, %v175
    %v189 = vpack.c.b16 %v178, %v177
    %v190 = vpack.c.b16 %v180, %v179
    %v191 = vpack.c.b16 %v182, %v181
    %v192 = vpack.c.b16 %v184, %v183
    %201 = vmatprep.subr.bf16.mxu0 0
    %202 = vmatpush1.bf16.msra.mxu0 %v192
    %203 = vmatprep.subr.bf16.mxu0 0
    %204 = vmatpush1.bf16.msra.mxu0 %v191
    %205 = vmatprep.subr.bf16.mxu0 0
    %206 = vmatpush1.bf16.msra.mxu0 %v190
    %207 = vmatprep.subr.bf16.mxu0 0
    %208 = vmatpush1.bf16.msra.mxu0 %v189
    %209 = vmatprep.subr.bf16.mxu0 0
    %210 = vmatpush1.bf16.msra.mxu0 %v188
    %211 = vmatprep.subr.bf16.mxu0 0
    %212 = vmatpush1.bf16.msra.mxu0 %v187
    %213 = vmatprep.subr.bf16.mxu0 0
    %214 = vmatpush1.bf16.msra.mxu0 %v186
    %215 = vmatprep.subr.bf16.mxu0 0
    %216 = vmatpush1.bf16.msra.mxu0 %v185
    %217 = vmatprep.subr.bf16.mxu0 0
    %218 = vmatpush2.bf16.msra.mxu0 0
    %219 = vmatprep.subr.bf16.mxu0 0
    %220 = vmatpush2.bf16.msra.mxu0 0
    %221 = vmatprep.subr.bf16.mxu0 0
    %222 = vmatpush2.bf16.msra.mxu0 0
    %223 = vmatprep.subr.bf16.mxu0 0
    %224 = vmatpush2.bf16.msra.mxu0 0
    %225 = vmatprep.subr.bf16.mxu0 0
    %226 = vmatpush2.bf16.msra.mxu0 0
    %227 = vmatprep.subr.bf16.mxu0 0
    %228 = vmatpush2.bf16.msra.mxu0 0
    %229 = vmatprep.subr.bf16.mxu0 0
    %230 = vmatpush2.bf16.msra.mxu0 0
    %231 = vmatprep.subr.bf16.mxu0 0
    %232 = vmatpush2.bf16.msra.mxu0 0
    %233 = vmatprep.mubr.bf16.mxu0 0
    %234 = vmatmul.mubr.bf16.gmra.mxu0 %v122
    %v235 = vpop.f32.mrf.mxu0
    %v236 = vadd.f32 %v151, %v235
    %v237 = vpop.f32.mrf.mxu0
    %v238 = vpop.f32.mrf.mxu0
    %v239 = vadd.f32 %v151, %v238
    %v240 = vpop.f32.mrf.mxu0
    %241 = vmatprep.mubr.bf16.mxu0 0
    %242 = vmatmul.mubr.bf16.gmra.mxu0 %v123
    %v243 = vpop.f32.mrf.mxu0
    %v244 = vadd.f32 %v151, %v243
    %v245 = vpop.f32.mrf.mxu0
    %v246 = vpop.f32.mrf.mxu0
    %v247 = vadd.f32 %v151, %v246
    %v248 = vpop.f32.mrf.mxu0
    %249 = vmatprep.mubr.bf16.mxu0 0
    %250 = vmatmul.mubr.bf16.gmra.mxu0 %v124
    %v251 = vpop.f32.mrf.mxu0
    %v252 = vadd.f32 %v151, %v251
    %v253 = vpop.f32.mrf.mxu0
    %v254 = vpop.f32.mrf.mxu0
    %v255 = vadd.f32 %v151, %v254
    %v256 = vpop.f32.mrf.mxu0
    %257 = vmatprep.mubr.bf16.mxu0 0
    %258 = vmatmul.mubr.bf16.gmra.mxu0 %v125
    %v259 = vpop.f32.mrf.mxu0
    %v260 = vadd.f32 %v151, %v259
    %v261 = vpop.f32.mrf.mxu0
    %v262 = vpop.f32.mrf.mxu0
    %v263 = vadd.f32 %v151, %v262
    %v264 = vpop.f32.mrf.mxu0
    %265 = vmatprep.mubr.bf16.mxu0 0
    %266 = vmatmul.mubr.bf16.gmra.mxu0 %v126
    %v267 = vpop.f32.mrf.mxu0
    %v268 = vadd.f32 %v151, %v267
    %v269 = vpop.f32.mrf.mxu0
    %v270 = vpop.f32.mrf.mxu0
    %v271 = vadd.f32 %v151, %v270
    %v272 = vpop.f32.mrf.mxu0
    %273 = vmatprep.mubr.bf16.mxu0 0
    %274 = vmatmul.mubr.bf16.gmra.mxu0 %v127
    %v275 = vpop.f32.mrf.mxu0
    %v276 = vadd.f32 %v151, %v275
    %v277 = vpop.f32.mrf.mxu0
    %v278 = vpop.f32.mrf.mxu0
    %v279 = vadd.f32 %v151, %v278
    %v280 = vpop.f32.mrf.mxu0
    %281 = vmatprep.mubr.bf16.mxu0 0
    %282 = vmatmul.mubr.bf16.gmra.mxu0 %v128
    %v283 = vpop.f32.mrf.mxu0
    %v284 = vadd.f32 %v151, %v283
    %v285 = vpop.f32.mrf.mxu0
    %v286 = vpop.f32.mrf.mxu0
    %v287 = vadd.f32 %v151, %v286
    %v288 = vpop.f32.mrf.mxu0
    %289 = vmatprep.mubr.bf16.mxu0 0
    %290 = vmatmul.mubr.bf16.gmra.mxu0 %v129
    %v291 = vpop.f32.mrf.mxu0
    %v292 = vadd.f32 %v151, %v291
    %v293 = vpop.f32.mrf.mxu0
    %v294 = vpop.f32.mrf.mxu0
    %v295 = vadd.f32 %v151, %v294
    %v296 = vpop.f32.mrf.mxu0
    %297 = vdwg.mxu0
    %vm298 = vcmp.gt.f32.partialorder %v236, 0.0
    %vm299 = vcmp.gt.f32.partialorder %v239, 0.0
    %vm300 = vcmp.gt.f32.partialorder %v244, 0.0
    %vm301 = vcmp.gt.f32.partialorder %v247, 0.0
    %vm302 = vcmp.gt.f32.partialorder %v252, 0.0
    %vm303 = vcmp.gt.f32.partialorder %v255, 0.0
    %vm304 = vcmp.gt.f32.partialorder %v260, 0.0
    %vm305 = vcmp.gt.f32.partialorder %v263, 0.0
    %vm306 = vcmp.gt.f32.partialorder %v268, 0.0
    %vm307 = vcmp.gt.f32.partialorder %v271, 0.0
    %vm308 = vcmp.gt.f32.partialorder %v276, 0.0
    %vm309 = vcmp.gt.f32.partialorder %v279, 0.0
    %vm310 = vcmp.gt.f32.partialorder %v284, 0.0
    %vm311 = vcmp.gt.f32.partialorder %v287, 0.0
    %vm312 = vcmp.gt.f32.partialorder %v292, 0.0
    %vm313 = vcmp.gt.f32.partialorder %v295, 0.0
    %v314 = vmul.f32 %v236, 1.442695
    %v315 = vpow.pop %v314
    %v316 = vmul.f32 %v239, 1.442695
    %v317 = vpow.pop %v316
    %v318 = vmul.f32 %v244, 1.442695
    %v319 = vpow.pop %v318
    %v320 = vmul.f32 %v247, 1.442695
    %v321 = vpow.pop %v320
    %v322 = vmul.f32 %v252, 1.442695
    %v323 = vpow.pop %v322
    %v324 = vmul.f32 %v255, 1.442695
    %v325 = vpow.pop %v324
    %v326 = vmul.f32 %v260, 1.442695
    %v327 = vpow.pop %v326
    %v328 = vmul.f32 %v263, 1.442695
    %v329 = vpow.pop %v328
    %v330 = vmul.f32 %v268, 1.442695
    %v331 = vpow.pop %v330
    %v332 = vmul.f32 %v271, 1.442695
    %v333 = vpow.pop %v332
    %v334 = vmul.f32 %v276, 1.442695
    %v335 = vpow.pop %v334
    %v336 = vmul.f32 %v279, 1.442695
    %v337 = vpow.pop %v336
    %v338 = vmul.f32 %v284, 1.442695
    %v339 = vpow.pop %v338
    %v340 = vmul.f32 %v287, 1.442695
    %v341 = vpow.pop %v340
    %v342 = vmul.f32 %v292, 1.442695
    %v343 = vpow.pop %v342
    %v344 = vmul.f32 %v295, 1.442695
    %v345 = vpow.pop %v344
    %v346 = vsub.f32 %v315, 1.0
    %v347 = vsub.f32 %v317, 1.0
    %v348 = vsub.f32 %v319, 1.0
    %v349 = vsub.f32 %v321, 1.0
    %v350 = vsub.f32 %v323, 1.0
    %v351 = vsub.f32 %v325, 1.0
    %v352 = vsub.f32 %v327, 1.0
    %v353 = vsub.f32 %v329, 1.0
    %v354 = vsub.f32 %v331, 1.0
    %v355 = vsub.f32 %v333, 1.0
    %v356 = vsub.f32 %v335, 1.0
    %v357 = vsub.f32 %v337, 1.0
    %v358 = vsub.f32 %v339, 1.0
    %v359 = vsub.f32 %v341, 1.0
    %v360 = vsub.f32 %v343, 1.0
    %v361 = vsub.f32 %v345, 1.0
    %v362 = vmul.f32 %v346, 1.6732632
    %v363 = vmul.f32 %v347, 1.6732632
    %v364 = vmul.f32 %v348, 1.6732632
    %v365 = vmul.f32 %v349, 1.6732632
    %v366 = vmul.f32 %v350, 1.6732632
    %v367 = vmul.f32 %v351, 1.6732632
    %v368 = vmul.f32 %v352, 1.6732632
    %v369 = vmul.f32 %v353, 1.6732632
    %v370 = vmul.f32 %v354, 1.6732632
    %v371 = vmul.f32 %v355, 1.6732632
    %v372 = vmul.f32 %v356, 1.6732632
    %v373 = vmul.f32 %v357, 1.6732632
    %v374 = vmul.f32 %v358, 1.6732632
    %v375 = vmul.f32 %v359, 1.6732632
    %v376 = vmul.f32 %v360, 1.6732632
    %v377 = vmul.f32 %v361, 1.6732632
    %v378 = vsel %vm298, %v236, %v362
    %v379 = vsel %vm299, %v239, %v363
    %v380 = vsel %vm300, %v244, %v364
    %v381 = vsel %vm301, %v247, %v365
    %v382 = vsel %vm302, %v252, %v366
    %v383 = vsel %vm303, %v255, %v367
    %v384 = vsel %vm304, %v260, %v368
    %v385 = vsel %vm305, %v263, %v369
    %v386 = vsel %vm306, %v268, %v370
    %v387 = vsel %vm307, %v271, %v371
    %v388 = vsel %vm308, %v276, %v372
    %v389 = vsel %vm309, %v279, %v373
    %v390 = vsel %vm310, %v284, %v374
    %v391 = vsel %vm311, %v287, %v375
    %v392 = vsel %vm312, %v292, %v376
    %v393 = vsel %vm313, %v295, %v377
    %v394 = vmul.f32 %v378, 1.050701
    %v395 = vmul.f32 %v379, 1.050701
    %v396 = vmul.f32 %v380, 1.050701
    %v397 = vmul.f32 %v381, 1.050701
    %v398 = vmul.f32 %v382, 1.050701
    %v399 = vmul.f32 %v383, 1.050701
    %v400 = vmul.f32 %v384, 1.050701
    %v401 = vmul.f32 %v385, 1.050701
    %v402 = vmul.f32 %v386, 1.050701
    %v403 = vmul.f32 %v387, 1.050701
    %v404 = vmul.f32 %v388, 1.050701
    %v405 = vmul.f32 %v389, 1.050701
    %v406 = vmul.f32 %v390, 1.050701
    %v407 = vmul.f32 %v391, 1.050701
    %v408 = vmul.f32 %v392, 1.050701
    %v409 = vmul.f32 %v393, 1.050701
    %v410 = vpack.c.bf16 %v395, %v394
    %v411 = vpack.c.bf16 %v397, %v396
    %v412 = vpack.c.bf16 %v399, %v398
    %v413 = vpack.c.bf16 %v401, %v400
    %v414 = vpack.c.bf16 %v403, %v402
    %v415 = vpack.c.bf16 %v405, %v404
    %v416 = vpack.c.bf16 %v407, %v406
    %v417 = vpack.c.bf16 %v409, %v408
    %s418 = scalar_lea.vmem [#allocation6], 64
    %v419 = vld [vmem:[%s418] sm:$0xf]
    %v420 = vld [vmem:[%s418 + $0x4] sm:$0xf]
    %v421 = vld [vmem:[%s418 + $0x8] sm:$0xf]
    %v422 = vld [vmem:[%s418 + $0xc] sm:$0xf]
    %v423 = vld [vmem:[%s418 + $0x10] sm:$0xf]
    %v424 = vld [vmem:[%s418 + $0x14] sm:$0xf]
    %v425 = vld [vmem:[%s418 + $0x18] sm:$0xf]
    %v426 = vld [vmem:[%s418 + $0x1c] sm:$0xf]
    %v427 = vld [vmem:[%s418 + $0x20] sm:$0xf]
    %v428 = vld [vmem:[%s418 + $0x24] sm:$0xf]
    %v429 = vld [vmem:[%s418 + $0x28] sm:$0xf]
    %v430 = vld [vmem:[%s418 + $0x2c] sm:$0xf]
    %v431 = vld [vmem:[%s418 + $0x30] sm:$0xf]
    %v432 = vld [vmem:[%s418 + $0x34] sm:$0xf]
    %v433 = vld [vmem:[%s418 + $0x38] sm:$0xf]
    %v434 = vld [vmem:[%s418 + $0x3c] sm:$0xf]
    %s435 = scalar_lea.vmem [#allocation8], 1
    %v436 = vld [vmem:[%s435] sm:$0x1]
    %v438 = vlaneseq
    %v439 = vshrl.u32 %v438, 7
    %v440 = vsub.s32 0, %v439
    %v441 = vrot.slane %v436, %v440
    %v459 = vunpack.c.l.b16 %v419
    %v460 = vunpack.c.l.b16 %v420
    %v461 = vunpack.c.l.b16 %v421
    %v462 = vunpack.c.l.b16 %v422
    %v463 = vunpack.c.l.b16 %v423
    %v464 = vunpack.c.l.b16 %v424
    %v465 = vunpack.c.l.b16 %v425
    %v466 = vunpack.c.l.b16 %v426
    %v467 = vunpack.c.l.b16 %v427
    %v468 = vunpack.c.l.b16 %v428
    %v469 = vunpack.c.l.b16 %v429
    %v470 = vunpack.c.l.b16 %v430
    %v471 = vunpack.c.l.b16 %v431
    %v472 = vunpack.c.l.b16 %v432
    %v473 = vunpack.c.l.b16 %v433
    %v474 = vunpack.c.l.b16 %v434
    %v475 = vpack.c.b16 %v460, %v459
    %v476 = vpack.c.b16 %v462, %v461
    %v477 = vpack.c.b16 %v464, %v463
    %v478 = vpack.c.b16 %v466, %v465
    %v479 = vpack.c.b16 %v468, %v467
    %v480 = vpack.c.b16 %v470, %v469
    %v481 = vpack.c.b16 %v472, %v471
    %v482 = vpack.c.b16 %v474, %v473
    %491 = vmatprep.subr.bf16.mxu0 0
    %492 = vmatpush1.bf16.msra.mxu0 %v482
    %493 = vmatprep.subr.bf16.mxu0 0
    %494 = vmatpush1.bf16.msra.mxu0 %v481
    %495 = vmatprep.subr.bf16.mxu0 0
    %496 = vmatpush1.bf16.msra.mxu0 %v480
    %497 = vmatprep.subr.bf16.mxu0 0
    %498 = vmatpush1.bf16.msra.mxu0 %v479
    %499 = vmatprep.subr.bf16.mxu0 0
    %500 = vmatpush1.bf16.msra.mxu0 %v478
    %501 = vmatprep.subr.bf16.mxu0 0
    %502 = vmatpush1.bf16.msra.mxu0 %v477
    %503 = vmatprep.subr.bf16.mxu0 0
    %504 = vmatpush1.bf16.msra.mxu0 %v476
    %505 = vmatprep.subr.bf16.mxu0 0
    %506 = vmatpush1.bf16.msra.mxu0 %v475
    %507 = vmatprep.subr.bf16.mxu0 0
    %508 = vmatpush2.bf16.msra.mxu0 0
    %509 = vmatprep.subr.bf16.mxu0 0
    %510 = vmatpush2.bf16.msra.mxu0 0
    %511 = vmatprep.subr.bf16.mxu0 0
    %512 = vmatpush2.bf16.msra.mxu0 0
    %513 = vmatprep.subr.bf16.mxu0 0
    %514 = vmatpush2.bf16.msra.mxu0 0
    %515 = vmatprep.subr.bf16.mxu0 0
    %516 = vmatpush2.bf16.msra.mxu0 0
    %517 = vmatprep.subr.bf16.mxu0 0
    %518 = vmatpush2.bf16.msra.mxu0 0
    %519 = vmatprep.subr.bf16.mxu0 0
    %520 = vmatpush2.bf16.msra.mxu0 0
    %521 = vmatprep.subr.bf16.mxu0 0
    %522 = vmatpush2.bf16.msra.mxu0 0
    %523 = vmatprep.mubr.bf16.mxu0 0
    %524 = vmatmul.mubr.bf16.gmra.mxu0 %v410
    %v525 = vpop.f32.mrf.mxu0
    %v526 = vadd.f32 %v441, %v525
    %v527 = vpop.f32.mrf.mxu0
    %v528 = vpop.f32.mrf.mxu0
    %v529 = vadd.f32 %v441, %v528
    %v530 = vpop.f32.mrf.mxu0
    %531 = vmatprep.mubr.bf16.mxu0 0
    %532 = vmatmul.mubr.bf16.gmra.mxu0 %v411
    %v533 = vpop.f32.mrf.mxu0
    %v534 = vadd.f32 %v441, %v533
    %v535 = vpop.f32.mrf.mxu0
    %v536 = vpop.f32.mrf.mxu0
    %v537 = vadd.f32 %v441, %v536
    %v538 = vpop.f32.mrf.mxu0
    %539 = vmatprep.mubr.bf16.mxu0 0
    %540 = vmatmul.mubr.bf16.gmra.mxu0 %v412
    %v541 = vpop.f32.mrf.mxu0
    %v542 = vadd.f32 %v441, %v541
    %v543 = vpop.f32.mrf.mxu0
    %v544 = vpop.f32.mrf.mxu0
    %v545 = vadd.f32 %v441, %v544
    %v546 = vpop.f32.mrf.mxu0
    %547 = vmatprep.mubr.bf16.mxu0 0
    %548 = vmatmul.mubr.bf16.gmra.mxu0 %v413
    %v549 = vpop.f32.mrf.mxu0
    %v550 = vadd.f32 %v441, %v549
    %v551 = vpop.f32.mrf.mxu0
    %v552 = vpop.f32.mrf.mxu0
    %v553 = vadd.f32 %v441, %v552
    %v554 = vpop.f32.mrf.mxu0
    %555 = vmatprep.mubr.bf16.mxu0 0
    %556 = vmatmul.mubr.bf16.gmra.mxu0 %v414
    %v557 = vpop.f32.mrf.mxu0
    %v558 = vadd.f32 %v441, %v557
    %v559 = vpop.f32.mrf.mxu0
    %v560 = vpop.f32.mrf.mxu0
    %v561 = vadd.f32 %v441, %v560
    %v562 = vpop.f32.mrf.mxu0
    %563 = vmatprep.mubr.bf16.mxu0 0
    %564 = vmatmul.mubr.bf16.gmra.mxu0 %v415
    %v565 = vpop.f32.mrf.mxu0
    %v566 = vadd.f32 %v441, %v565
    %v567 = vpop.f32.mrf.mxu0
    %v568 = vpop.f32.mrf.mxu0
    %v569 = vadd.f32 %v441, %v568
    %v570 = vpop.f32.mrf.mxu0
    %571 = vmatprep.mubr.bf16.mxu0 0
    %572 = vmatmul.mubr.bf16.gmra.mxu0 %v416
    %v573 = vpop.f32.mrf.mxu0
    %v574 = vadd.f32 %v441, %v573
    %v575 = vpop.f32.mrf.mxu0
    %v576 = vpop.f32.mrf.mxu0
    %v577 = vadd.f32 %v441, %v576
    %v578 = vpop.f32.mrf.mxu0
    %579 = vmatprep.mubr.bf16.mxu0 0
    %580 = vmatmul.mubr.bf16.gmra.mxu0 %v417
    %v581 = vpop.f32.mrf.mxu0
    %v582 = vadd.f32 %v441, %v581
    %v583 = vpop.f32.mrf.mxu0
    %v584 = vpop.f32.mrf.mxu0
    %v585 = vadd.f32 %v441, %v584
    %v586 = vpop.f32.mrf.mxu0
    %587 = vdwg.mxu0
    %vm588 = vcmp.gt.f32.partialorder %v526, 0.0
    %vm589 = vcmp.gt.f32.partialorder %v529, 0.0
    %vm590 = vcmp.gt.f32.partialorder %v534, 0.0
    %vm591 = vcmp.gt.f32.partialorder %v537, 0.0
    %vm592 = vcmp.gt.f32.partialorder %v542, 0.0
    %vm593 = vcmp.gt.f32.partialorder %v545, 0.0
    %vm594 = vcmp.gt.f32.partialorder %v550, 0.0
    %vm595 = vcmp.gt.f32.partialorder %v553, 0.0
    %vm596 = vcmp.gt.f32.partialorder %v558, 0.0
    %vm597 = vcmp.gt.f32.partialorder %v561, 0.0
    %vm598 = vcmp.gt.f32.partialorder %v566, 0.0
    %vm599 = vcmp.gt.f32.partialorder %v569, 0.0
    %vm600 = vcmp.gt.f32.partialorder %v574, 0.0
    %vm601 = vcmp.gt.f32.partialorder %v577, 0.0
    %vm602 = vcmp.gt.f32.partialorder %v582, 0.0
    %vm603 = vcmp.gt.f32.partialorder %v585, 0.0
    %v604 = vmul.f32 %v526, 1.442695
    %v605 = vpow.pop %v604
    %v606 = vmul.f32 %v529, 1.442695
    %v607 = vpow.pop %v606
    %v608 = vmul.f32 %v534, 1.442695
    %v609 = vpow.pop %v608
    %v610 = vmul.f32 %v537, 1.442695
    %v611 = vpow.pop %v610
    %v612 = vmul.f32 %v542, 1.442695
    %v613 = vpow.pop %v612
    %v614 = vmul.f32 %v545, 1.442695
    %v615 = vpow.pop %v614
    %v616 = vmul.f32 %v550, 1.442695
    %v617 = vpow.pop %v616
    %v618 = vmul.f32 %v553, 1.442695
    %v619 = vpow.pop %v618
    %v620 = vmul.f32 %v558, 1.442695
    %v621 = vpow.pop %v620
    %v622 = vmul.f32 %v561, 1.442695
    %v623 = vpow.pop %v622
    %v624 = vmul.f32 %v566, 1.442695
    %v625 = vpow.pop %v624
    %v626 = vmul.f32 %v569, 1.442695
    %v627 = vpow.pop %v626
    %v628 = vmul.f32 %v574, 1.442695
    %v629 = vpow.pop %v628
    %v630 = vmul.f32 %v577, 1.442695
    %v631 = vpow.pop %v630
    %v632 = vmul.f32 %v582, 1.442695
    %v633 = vpow.pop %v632
    %v634 = vmul.f32 %v585, 1.442695
    %v635 = vpow.pop %v634
    %v636 = vsub.f32 %v605, 1.0
    %v637 = vsub.f32 %v607, 1.0
    %v638 = vsub.f32 %v609, 1.0
    %v639 = vsub.f32 %v611, 1.0
    %v640 = vsub.f32 %v613, 1.0
    %v641 = vsub.f32 %v615, 1.0
    %v642 = vsub.f32 %v617, 1.0
    %v643 = vsub.f32 %v619, 1.0
    %v644 = vsub.f32 %v621, 1.0
    %v645 = vsub.f32 %v623, 1.0
    %v646 = vsub.f32 %v625, 1.0
    %v647 = vsub.f32 %v627, 1.0
    %v648 = vsub.f32 %v629, 1.0
    %v649 = vsub.f32 %v631, 1.0
    %v650 = vsub.f32 %v633, 1.0
    %v651 = vsub.f32 %v635, 1.0
    %v652 = vmul.f32 %v636, 1.6732632
    %v653 = vmul.f32 %v637, 1.6732632
    %v654 = vmul.f32 %v638, 1.6732632
    %v655 = vmul.f32 %v639, 1.6732632
    %v656 = vmul.f32 %v640, 1.6732632
    %v657 = vmul.f32 %v641, 1.6732632
    %v658 = vmul.f32 %v642, 1.6732632
    %v659 = vmul.f32 %v643, 1.6732632
    %v660 = vmul.f32 %v644, 1.6732632
    %v661 = vmul.f32 %v645, 1.6732632
    %v662 = vmul.f32 %v646, 1.6732632
    %v663 = vmul.f32 %v647, 1.6732632
    %v664 = vmul.f32 %v648, 1.6732632
    %v665 = vmul.f32 %v649, 1.6732632
    %v666 = vmul.f32 %v650, 1.6732632
    %v667 = vmul.f32 %v651, 1.6732632
    %v668 = vsel %vm588, %v526, %v652
    %v669 = vsel %vm589, %v529, %v653
    %v670 = vsel %vm590, %v534, %v654
    %v671 = vsel %vm591, %v537, %v655
    %v672 = vsel %vm592, %v542, %v656
    %v673 = vsel %vm593, %v545, %v657
    %v674 = vsel %vm594, %v550, %v658
    %v675 = vsel %vm595, %v553, %v659
    %v676 = vsel %vm596, %v558, %v660
    %v677 = vsel %vm597, %v561, %v661
    %v678 = vsel %vm598, %v566, %v662
    %v679 = vsel %vm599, %v569, %v663
    %v680 = vsel %vm600, %v574, %v664
    %v681 = vsel %vm601, %v577, %v665
    %v682 = vsel %vm602, %v582, %v666
    %v683 = vsel %vm603, %v585, %v667
    %v684 = vmul.f32 %v668, 1.050701
    %v685 = vmul.f32 %v669, 1.050701
    %v686 = vmul.f32 %v670, 1.050701
    %v687 = vmul.f32 %v671, 1.050701
    %v688 = vmul.f32 %v672, 1.050701
    %v689 = vmul.f32 %v673, 1.050701
    %v690 = vmul.f32 %v674, 1.050701
    %v691 = vmul.f32 %v675, 1.050701
    %v692 = vmul.f32 %v676, 1.050701
    %v693 = vmul.f32 %v677, 1.050701
    %v694 = vmul.f32 %v678, 1.050701
    %v695 = vmul.f32 %v679, 1.050701
    %v696 = vmul.f32 %v680, 1.050701
    %v697 = vmul.f32 %v681, 1.050701
    %v698 = vmul.f32 %v682, 1.050701
    %v699 = vmul.f32 %v683, 1.050701
    %v700 = vpack.c.bf16 %v685, %v684
    %v701 = vpack.c.bf16 %v687, %v686
    %v702 = vpack.c.bf16 %v689, %v688
    %v703 = vpack.c.bf16 %v691, %v690
    %v704 = vpack.c.bf16 %v693, %v692
    %v705 = vpack.c.bf16 %v695, %v694
    %v706 = vpack.c.bf16 %v697, %v696
    %v707 = vpack.c.bf16 %v699, %v698
    %s708 = scalar_lea.vmem [#allocation6], 128
    %v709 = vld [vmem:[%s708] sm:$0xf]
    %v710 = vld [vmem:[%s708 + $0x4] sm:$0xf]
    %v711 = vld [vmem:[%s708 + $0x8] sm:$0xf]
    %v712 = vld [vmem:[%s708 + $0xc] sm:$0xf]
    %v713 = vld [vmem:[%s708 + $0x10] sm:$0xf]
    %v714 = vld [vmem:[%s708 + $0x14] sm:$0xf]
    %v715 = vld [vmem:[%s708 + $0x18] sm:$0xf]
    %v716 = vld [vmem:[%s708 + $0x1c] sm:$0xf]
    %v717 = vld [vmem:[%s708 + $0x20] sm:$0xf]
    %v718 = vld [vmem:[%s708 + $0x24] sm:$0xf]
    %v719 = vld [vmem:[%s708 + $0x28] sm:$0xf]
    %v720 = vld [vmem:[%s708 + $0x2c] sm:$0xf]
    %v721 = vld [vmem:[%s708 + $0x30] sm:$0xf]
    %v722 = vld [vmem:[%s708 + $0x34] sm:$0xf]
    %v723 = vld [vmem:[%s708 + $0x38] sm:$0xf]
    %v724 = vld [vmem:[%s708 + $0x3c] sm:$0xf]
    %s725 = scalar_lea.vmem [#allocation8], 2
    %v726 = vld [vmem:[%s725] sm:$0x1]
    %v728 = vlaneseq
    %v729 = vshrl.u32 %v728, 7
    %v730 = vsub.s32 0, %v729
    %v731 = vrot.slane %v726, %v730
    %v749 = vunpack.c.l.b16 %v709
    %v750 = vunpack.c.l.b16 %v710
    %v751 = vunpack.c.l.b16 %v711
    %v752 = vunpack.c.l.b16 %v712
    %v753 = vunpack.c.l.b16 %v713
    %v754 = vunpack.c.l.b16 %v714
    %v755 = vunpack.c.l.b16 %v715
    %v756 = vunpack.c.l.b16 %v716
    %v757 = vunpack.c.l.b16 %v717
    %v758 = vunpack.c.l.b16 %v718
    %v759 = vunpack.c.l.b16 %v719
    %v760 = vunpack.c.l.b16 %v720
    %v761 = vunpack.c.l.b16 %v721
    %v762 = vunpack.c.l.b16 %v722
    %v763 = vunpack.c.l.b16 %v723
    %v764 = vunpack.c.l.b16 %v724
    %v765 = vpack.c.b16 %v750, %v749
    %v766 = vpack.c.b16 %v752, %v751
    %v767 = vpack.c.b16 %v754, %v753
    %v768 = vpack.c.b16 %v756, %v755
    %v769 = vpack.c.b16 %v758, %v757
    %v770 = vpack.c.b16 %v760, %v759
    %v771 = vpack.c.b16 %v762, %v761
    %v772 = vpack.c.b16 %v764, %v763
    %781 = vmatprep.subr.bf16.mxu0 0
    %782 = vmatpush1.bf16.msra.mxu0 %v772
    %783 = vmatprep.subr.bf16.mxu0 0
    %784 = vmatpush1.bf16.msra.mxu0 %v771
    %785 = vmatprep.subr.bf16.mxu0 0
    %786 = vmatpush1.bf16.msra.mxu0 %v770
    %787 = vmatprep.subr.bf16.mxu0 0
    %788 = vmatpush1.bf16.msra.mxu0 %v769
    %789 = vmatprep.subr.bf16.mxu0 0
    %790 = vmatpush1.bf16.msra.mxu0 %v768
    %791 = vmatprep.subr.bf16.mxu0 0
    %792 = vmatpush1.bf16.msra.mxu0 %v767
    %793 = vmatprep.subr.bf16.mxu0 0
    %794 = vmatpush1.bf16.msra.mxu0 %v766
    %795 = vmatprep.subr.bf16.mxu0 0
    %796 = vmatpush1.bf16.msra.mxu0 %v765
    %797 = vmatprep.subr.bf16.mxu0 0
    %798 = vmatpush2.bf16.msra.mxu0 0
    %799 = vmatprep.subr.bf16.mxu0 0
    %800 = vmatpush2.bf16.msra.mxu0 0
    %801 = vmatprep.subr.bf16.mxu0 0
    %802 = vmatpush2.bf16.msra.mxu0 0
    %803 = vmatprep.subr.bf16.mxu0 0
    %804 = vmatpush2.bf16.msra.mxu0 0
    %805 = vmatprep.subr.bf16.mxu0 0
    %806 = vmatpush2.bf16.msra.mxu0 0
    %807 = vmatprep.subr.bf16.mxu0 0
    %808 = vmatpush2.bf16.msra.mxu0 0
    %809 = vmatprep.subr.bf16.mxu0 0
    %810 = vmatpush2.bf16.msra.mxu0 0
    %811 = vmatprep.subr.bf16.mxu0 0
    %812 = vmatpush2.bf16.msra.mxu0 0
    %813 = vmatprep.mubr.bf16.mxu0 0
    %814 = vmatmul.mubr.bf16.gmra.mxu0 %v700
    %v815 = vpop.f32.mrf.mxu0
    %v816 = vadd.f32 %v731, %v815
    %v817 = vpop.f32.mrf.mxu0
    %v818 = vpop.f32.mrf.mxu0
    %v819 = vadd.f32 %v731, %v818
    %v820 = vpop.f32.mrf.mxu0
    %821 = vmatprep.mubr.bf16.mxu0 0
    %822 = vmatmul.mubr.bf16.gmra.mxu0 %v701
    %v823 = vpop.f32.mrf.mxu0
    %v824 = vadd.f32 %v731, %v823
    %v825 = vpop.f32.mrf.mxu0
    %v826 = vpop.f32.mrf.mxu0
    %v827 = vadd.f32 %v731, %v826
    %v828 = vpop.f32.mrf.mxu0
    %829 = vmatprep.mubr.bf16.mxu0 0
    %830 = vmatmul.mubr.bf16.gmra.mxu0 %v702
    %v831 = vpop.f32.mrf.mxu0
    %v832 = vadd.f32 %v731, %v831
    %v833 = vpop.f32.mrf.mxu0
    %v834 = vpop.f32.mrf.mxu0
    %v835 = vadd.f32 %v731, %v834
    %v836 = vpop.f32.mrf.mxu0
    %837 = vmatprep.mubr.bf16.mxu0 0
    %838 = vmatmul.mubr.bf16.gmra.mxu0 %v703
    %v839 = vpop.f32.mrf.mxu0
    %v840 = vadd.f32 %v731, %v839
    %v841 = vpop.f32.mrf.mxu0
    %v842 = vpop.f32.mrf.mxu0
    %v843 = vadd.f32 %v731, %v842
    %v844 = vpop.f32.mrf.mxu0
    %845 = vmatprep.mubr.bf16.mxu0 0
    %846 = vmatmul.mubr.bf16.gmra.mxu0 %v704
    %v847 = vpop.f32.mrf.mxu0
    %v848 = vadd.f32 %v731, %v847
    %v849 = vpop.f32.mrf.mxu0
    %v850 = vpop.f32.mrf.mxu0
    %v851 = vadd.f32 %v731, %v850
    %v852 = vpop.f32.mrf.mxu0
    %853 = vmatprep.mubr.bf16.mxu0 0
    %854 = vmatmul.mubr.bf16.gmra.mxu0 %v705
    %v855 = vpop.f32.mrf.mxu0
    %v856 = vadd.f32 %v731, %v855
    %v857 = vpop.f32.mrf.mxu0
    %v858 = vpop.f32.mrf.mxu0
    %v859 = vadd.f32 %v731, %v858
    %v860 = vpop.f32.mrf.mxu0
    %861 = vmatprep.mubr.bf16.mxu0 0
    %862 = vmatmul.mubr.bf16.gmra.mxu0 %v706
    %v863 = vpop.f32.mrf.mxu0
    %v864 = vadd.f32 %v731, %v863
    %v865 = vpop.f32.mrf.mxu0
    %v866 = vpop.f32.mrf.mxu0
    %v867 = vadd.f32 %v731, %v866
    %v868 = vpop.f32.mrf.mxu0
    %869 = vmatprep.mubr.bf16.mxu0 0
    %870 = vmatmul.mubr.bf16.gmra.mxu0 %v707
    %v871 = vpop.f32.mrf.mxu0
    %v872 = vadd.f32 %v731, %v871
    %v873 = vpop.f32.mrf.mxu0
    %v874 = vpop.f32.mrf.mxu0
    %v875 = vadd.f32 %v731, %v874
    %v876 = vpop.f32.mrf.mxu0
    %877 = vdwg.mxu0
    %vm878 = vcmp.gt.f32.partialorder %v816, 0.0
    %vm879 = vcmp.gt.f32.partialorder %v819, 0.0
    %vm880 = vcmp.gt.f32.partialorder %v824, 0.0
    %vm881 = vcmp.gt.f32.partialorder %v827, 0.0
    %vm882 = vcmp.gt.f32.partialorder %v832, 0.0
    %vm883 = vcmp.gt.f32.partialorder %v835, 0.0
    %vm884 = vcmp.gt.f32.partialorder %v840, 0.0
    %vm885 = vcmp.gt.f32.partialorder %v843, 0.0
    %vm886 = vcmp.gt.f32.partialorder %v848, 0.0
    %vm887 = vcmp.gt.f32.partialorder %v851, 0.0
    %vm888 = vcmp.gt.f32.partialorder %v856, 0.0
    %vm889 = vcmp.gt.f32.partialorder %v859, 0.0
    %vm890 = vcmp.gt.f32.partialorder %v864, 0.0
    %vm891 = vcmp.gt.f32.partialorder %v867, 0.0
    %vm892 = vcmp.gt.f32.partialorder %v872, 0.0
    %vm893 = vcmp.gt.f32.partialorder %v875, 0.0
    %v894 = vmul.f32 %v816, 1.442695
    %v895 = vpow.pop %v894
    %v896 = vmul.f32 %v819, 1.442695
    %v897 = vpow.pop %v896
    %v898 = vmul.f32 %v824, 1.442695
    %v899 = vpow.pop %v898
    %v900 = vmul.f32 %v827, 1.442695
    %v901 = vpow.pop %v900
    %v902 = vmul.f32 %v832, 1.442695
    %v903 = vpow.pop %v902
    %v904 = vmul.f32 %v835, 1.442695
    %v905 = vpow.pop %v904
    %v906 = vmul.f32 %v840, 1.442695
    %v907 = vpow.pop %v906
    %v908 = vmul.f32 %v843, 1.442695
    %v909 = vpow.pop %v908
    %v910 = vmul.f32 %v848, 1.442695
    %v911 = vpow.pop %v910
    %v912 = vmul.f32 %v851, 1.442695
    %v913 = vpow.pop %v912
    %v914 = vmul.f32 %v856, 1.442695
    %v915 = vpow.pop %v914
    %v916 = vmul.f32 %v859, 1.442695
    %v917 = vpow.pop %v916
    %v918 = vmul.f32 %v864, 1.442695
    %v919 = vpow.pop %v918
    %v920 = vmul.f32 %v867, 1.442695
    %v921 = vpow.pop %v920
    %v922 = vmul.f32 %v872, 1.442695
    %v923 = vpow.pop %v922
    %v924 = vmul.f32 %v875, 1.442695
    %v925 = vpow.pop %v924
    %v926 = vsub.f32 %v895, 1.0
    %v927 = vsub.f32 %v897, 1.0
    %v928 = vsub.f32 %v899, 1.0
    %v929 = vsub.f32 %v901, 1.0
    %v930 = vsub.f32 %v903, 1.0
    %v931 = vsub.f32 %v905, 1.0
    %v932 = vsub.f32 %v907, 1.0
    %v933 = vsub.f32 %v909, 1.0
    %v934 = vsub.f32 %v911, 1.0
    %v935 = vsub.f32 %v913, 1.0
    %v936 = vsub.f32 %v915, 1.0
    %v937 = vsub.f32 %v917, 1.0
    %v938 = vsub.f32 %v919, 1.0
    %v939 = vsub.f32 %v921, 1.0
    %v940 = vsub.f32 %v923, 1.0
    %v941 = vsub.f32 %v925, 1.0
    %v942 = vmul.f32 %v926, 1.6732632
    %v943 = vmul.f32 %v927, 1.6732632
    %v944 = vmul.f32 %v928, 1.6732632
    %v945 = vmul.f32 %v929, 1.6732632
    %v946 = vmul.f32 %v930, 1.6732632
    %v947 = vmul.f32 %v931, 1.6732632
    %v948 = vmul.f32 %v932, 1.6732632
    %v949 = vmul.f32 %v933, 1.6732632
    %v950 = vmul.f32 %v934, 1.6732632
    %v951 = vmul.f32 %v935, 1.6732632
    %v952 = vmul.f32 %v936, 1.6732632
    %v953 = vmul.f32 %v937, 1.6732632
    %v954 = vmul.f32 %v938, 1.6732632
    %v955 = vmul.f32 %v939, 1.6732632
    %v956 = vmul.f32 %v940, 1.6732632
    %v957 = vmul.f32 %v941, 1.6732632
    %v958 = vsel %vm878, %v816, %v942
    %v959 = vsel %vm879, %v819, %v943
    %v960 = vsel %vm880, %v824, %v944
    %v961 = vsel %vm881, %v827, %v945
    %v962 = vsel %vm882, %v832, %v946
    %v963 = vsel %vm883, %v835, %v947
    %v964 = vsel %vm884, %v840, %v948
    %v965 = vsel %vm885, %v843, %v949
    %v966 = vsel %vm886, %v848, %v950
    %v967 = vsel %vm887, %v851, %v951
    %v968 = vsel %vm888, %v856, %v952
    %v969 = vsel %vm889, %v859, %v953
    %v970 = vsel %vm890, %v864, %v954
    %v971 = vsel %vm891, %v867, %v955
    %v972 = vsel %vm892, %v872, %v956
    %v973 = vsel %vm893, %v875, %v957
    %v974 = vmul.f32 %v958, 1.050701
    %v975 = vmul.f32 %v959, 1.050701
    %v976 = vmul.f32 %v960, 1.050701
    %v977 = vmul.f32 %v961, 1.050701
    %v978 = vmul.f32 %v962, 1.050701
    %v979 = vmul.f32 %v963, 1.050701
    %v980 = vmul.f32 %v964, 1.050701
    %v981 = vmul.f32 %v965, 1.050701
    %v982 = vmul.f32 %v966, 1.050701
    %v983 = vmul.f32 %v967, 1.050701
    %v984 = vmul.f32 %v968, 1.050701
    %v985 = vmul.f32 %v969, 1.050701
    %v986 = vmul.f32 %v970, 1.050701
    %v987 = vmul.f32 %v971, 1.050701
    %v988 = vmul.f32 %v972, 1.050701
    %v989 = vmul.f32 %v973, 1.050701
    %v990 = vpack.c.bf16 %v975, %v974
    %v991 = vpack.c.bf16 %v977, %v976
    %v992 = vpack.c.bf16 %v979, %v978
    %v993 = vpack.c.bf16 %v981, %v980
    %v994 = vpack.c.bf16 %v983, %v982
    %v995 = vpack.c.bf16 %v985, %v984
    %v996 = vpack.c.bf16 %v987, %v986
    %v997 = vpack.c.bf16 %v989, %v988
    %s998 = scalar_lea.vmem [#allocation6], 192
    %v999 = vld [vmem:[%s998] sm:$0xf]
    %v1000 = vld [vmem:[%s998 + $0x4] sm:$0xf]
    %v1001 = vld [vmem:[%s998 + $0x8] sm:$0xf]
    %v1002 = vld [vmem:[%s998 + $0xc] sm:$0xf]
    %v1003 = vld [vmem:[%s998 + $0x10] sm:$0xf]
    %v1004 = vld [vmem:[%s998 + $0x14] sm:$0xf]
    %v1005 = vld [vmem:[%s998 + $0x18] sm:$0xf]
    %v1006 = vld [vmem:[%s998 + $0x1c] sm:$0xf]
    %v1007 = vld [vmem:[%s998 + $0x20] sm:$0xf]
    %v1008 = vld [vmem:[%s998 + $0x24] sm:$0xf]
    %v1009 = vld [vmem:[%s998 + $0x28] sm:$0xf]
    %v1010 = vld [vmem:[%s998 + $0x2c] sm:$0xf]
    %v1011 = vld [vmem:[%s998 + $0x30] sm:$0xf]
    %v1012 = vld [vmem:[%s998 + $0x34] sm:$0xf]
    %v1013 = vld [vmem:[%s998 + $0x38] sm:$0xf]
    %v1014 = vld [vmem:[%s998 + $0x3c] sm:$0xf]
    %s1015 = scalar_lea.vmem [#allocation8], 3
    %v1016 = vld [vmem:[%s1015] sm:$0x1]
    %v1018 = vlaneseq
    %v1019 = vshrl.u32 %v1018, 7
    %v1020 = vsub.s32 0, %v1019
    %v1021 = vrot.slane %v1016, %v1020
    %v1039 = vunpack.c.l.b16 %v999
    %v1040 = vunpack.c.l.b16 %v1000
    %v1041 = vunpack.c.l.b16 %v1001
    %v1042 = vunpack.c.l.b16 %v1002
    %v1043 = vunpack.c.l.b16 %v1003
    %v1044 = vunpack.c.l.b16 %v1004
    %v1045 = vunpack.c.l.b16 %v1005
    %v1046 = vunpack.c.l.b16 %v1006
    %v1047 = vunpack.c.l.b16 %v1007
    %v1048 = vunpack.c.l.b16 %v1008
    %v1049 = vunpack.c.l.b16 %v1009
    %v1050 = vunpack.c.l.b16 %v1010
    %v1051 = vunpack.c.l.b16 %v1011
    %v1052 = vunpack.c.l.b16 %v1012
    %v1053 = vunpack.c.l.b16 %v1013
    %v1054 = vunpack.c.l.b16 %v1014
    %v1055 = vpack.c.b16 %v1040, %v1039
    %v1056 = vpack.c.b16 %v1042, %v1041
    %v1057 = vpack.c.b16 %v1044, %v1043
    %v1058 = vpack.c.b16 %v1046, %v1045
    %v1059 = vpack.c.b16 %v1048, %v1047
    %v1060 = vpack.c.b16 %v1050, %v1049
    %v1061 = vpack.c.b16 %v1052, %v1051
    %v1062 = vpack.c.b16 %v1054, %v1053
    %1071 = vmatprep.subr.bf16.mxu0 0
    %1072 = vmatpush1.bf16.msra.mxu0 %v1062
    %1073 = vmatprep.subr.bf16.mxu0 0
    %1074 = vmatpush1.bf16.msra.mxu0 %v1061
    %1075 = vmatprep.subr.bf16.mxu0 0
    %1076 = vmatpush1.bf16.msra.mxu0 %v1060
    %1077 = vmatprep.subr.bf16.mxu0 0
    %1078 = vmatpush1.bf16.msra.mxu0 %v1059
    %1079 = vmatprep.subr.bf16.mxu0 0
    %1080 = vmatpush1.bf16.msra.mxu0 %v1058
    %1081 = vmatprep.subr.bf16.mxu0 0
    %1082 = vmatpush1.bf16.msra.mxu0 %v1057
    %1083 = vmatprep.subr.bf16.mxu0 0
    %1084 = vmatpush1.bf16.msra.mxu0 %v1056
    %1085 = vmatprep.subr.bf16.mxu0 0
    %1086 = vmatpush1.bf16.msra.mxu0 %v1055
    %1087 = vmatprep.subr.bf16.mxu0 0
    %1088 = vmatpush2.bf16.msra.mxu0 0
    %1089 = vmatprep.subr.bf16.mxu0 0
    %1090 = vmatpush2.bf16.msra.mxu0 0
    %1091 = vmatprep.subr.bf16.mxu0 0
    %1092 = vmatpush2.bf16.msra.mxu0 0
    %1093 = vmatprep.subr.bf16.mxu0 0
    %1094 = vmatpush2.bf16.msra.mxu0 0
    %1095 = vmatprep.subr.bf16.mxu0 0
    %1096 = vmatpush2.bf16.msra.mxu0 0
    %1097 = vmatprep.subr.bf16.mxu0 0
    %1098 = vmatpush2.bf16.msra.mxu0 0
    %1099 = vmatprep.subr.bf16.mxu0 0
    %1100 = vmatpush2.bf16.msra.mxu0 0
    %1101 = vmatprep.subr.bf16.mxu0 0
    %1102 = vmatpush2.bf16.msra.mxu0 0
    %1103 = vmatprep.mubr.bf16.mxu0 0
    %1104 = vmatmul.mubr.bf16.gmra.mxu0 %v990
    %v1105 = vpop.f32.mrf.mxu0
    %v1106 = vadd.f32 %v1021, %v1105
    %v1107 = vpop.f32.mrf.mxu0
    %v1108 = vpop.f32.mrf.mxu0
    %v1109 = vadd.f32 %v1021, %v1108
    %v1110 = vpop.f32.mrf.mxu0
    %1111 = vmatprep.mubr.bf16.mxu0 0
    %1112 = vmatmul.mubr.bf16.gmra.mxu0 %v991
    %v1113 = vpop.f32.mrf.mxu0
    %v1114 = vadd.f32 %v1021, %v1113
    %v1115 = vpop.f32.mrf.mxu0
    %v1116 = vpop.f32.mrf.mxu0
    %v1117 = vadd.f32 %v1021, %v1116
    %v1118 = vpop.f32.mrf.mxu0
    %1119 = vmatprep.mubr.bf16.mxu0 0
    %1120 = vmatmul.mubr.bf16.gmra.mxu0 %v992
    %v1121 = vpop.f32.mrf.mxu0
    %v1122 = vadd.f32 %v1021, %v1121
    %v1123 = vpop.f32.mrf.mxu0
    %v1124 = vpop.f32.mrf.mxu0
    %v1125 = vadd.f32 %v1021, %v1124
    %v1126 = vpop.f32.mrf.mxu0
    %1127 = vmatprep.mubr.bf16.mxu0 0
    %1128 = vmatmul.mubr.bf16.gmra.mxu0 %v993
    %v1129 = vpop.f32.mrf.mxu0
    %v1130 = vadd.f32 %v1021, %v1129
    %v1131 = vpop.f32.mrf.mxu0
    %v1132 = vpop.f32.mrf.mxu0
    %v1133 = vadd.f32 %v1021, %v1132
    %v1134 = vpop.f32.mrf.mxu0
    %1135 = vmatprep.mubr.bf16.mxu0 0
    %1136 = vmatmul.mubr.bf16.gmra.mxu0 %v994
    %v1137 = vpop.f32.mrf.mxu0
    %v1138 = vadd.f32 %v1021, %v1137
    %v1139 = vpop.f32.mrf.mxu0
    %v1140 = vpop.f32.mrf.mxu0
    %v1141 = vadd.f32 %v1021, %v1140
    %v1142 = vpop.f32.mrf.mxu0
    %1143 = vmatprep.mubr.bf16.mxu0 0
    %1144 = vmatmul.mubr.bf16.gmra.mxu0 %v995
    %v1145 = vpop.f32.mrf.mxu0
    %v1146 = vadd.f32 %v1021, %v1145
    %v1147 = vpop.f32.mrf.mxu0
    %v1148 = vpop.f32.mrf.mxu0
    %v1149 = vadd.f32 %v1021, %v1148
    %v1150 = vpop.f32.mrf.mxu0
    %1151 = vmatprep.mubr.bf16.mxu0 0
    %1152 = vmatmul.mubr.bf16.gmra.mxu0 %v996
    %v1153 = vpop.f32.mrf.mxu0
    %v1154 = vadd.f32 %v1021, %v1153
    %v1155 = vpop.f32.mrf.mxu0
    %v1156 = vpop.f32.mrf.mxu0
    %v1157 = vadd.f32 %v1021, %v1156
    %v1158 = vpop.f32.mrf.mxu0
    %1159 = vmatprep.mubr.bf16.mxu0 0
    %1160 = vmatmul.mubr.bf16.gmra.mxu0 %v997
    %v1161 = vpop.f32.mrf.mxu0
    %v1162 = vadd.f32 %v1021, %v1161
    %v1163 = vpop.f32.mrf.mxu0
    %v1164 = vpop.f32.mrf.mxu0
    %v1165 = vadd.f32 %v1021, %v1164
    %v1166 = vpop.f32.mrf.mxu0
    %1167 = vdwg.mxu0
    %v1168 = vpack.c.bf16 %v1109, %v1106
    %v1169 = vpack.c.bf16 %v1117, %v1114
    %v1170 = vpack.c.bf16 %v1125, %v1122
    %v1171 = vpack.c.bf16 %v1133, %v1130
    %v1172 = vpack.c.bf16 %v1141, %v1138
    %v1173 = vpack.c.bf16 %v1149, %v1146
    %v1174 = vpack.c.bf16 %v1157, %v1154
    %v1175 = vpack.c.bf16 %v1165, %v1162
    %v1184 = vunpack.c.l.b16 %v1168
    %v1185 = vunpack.c.h.b16 %v1168
    %v1186 = vunpack.c.l.b16 %v1169
    %v1187 = vunpack.c.h.b16 %v1169
    %v1188 = vunpack.c.l.b16 %v1170
    %v1189 = vunpack.c.h.b16 %v1170
    %v1190 = vunpack.c.l.b16 %v1171
    %v1191 = vunpack.c.h.b16 %v1171
    %v1192 = vunpack.c.l.b16 %v1172
    %v1193 = vunpack.c.h.b16 %v1172
    %v1194 = vunpack.c.l.b16 %v1173
    %v1195 = vunpack.c.h.b16 %v1173
    %v1196 = vunpack.c.l.b16 %v1174
    %v1197 = vunpack.c.h.b16 %v1174
    %v1198 = vunpack.c.l.b16 %v1175
    %v1199 = vunpack.c.h.b16 %v1175
    %v1200 = vpack.c.b16 %v1184, %v1184
    %v1201 = vpack.c.b16 %v1185, %v1185
    %v1202 = vpack.c.b16 %v1186, %v1186
    %v1203 = vpack.c.b16 %v1187, %v1187
    %v1204 = vpack.c.b16 %v1188, %v1188
    %v1205 = vpack.c.b16 %v1189, %v1189
    %v1206 = vpack.c.b16 %v1190, %v1190
    %v1207 = vpack.c.b16 %v1191, %v1191
    %v1208 = vpack.c.b16 %v1192, %v1192
    %v1209 = vpack.c.b16 %v1193, %v1193
    %v1210 = vpack.c.b16 %v1194, %v1194
    %v1211 = vpack.c.b16 %v1195, %v1195
    %v1212 = vpack.c.b16 %v1196, %v1196
    %v1213 = vpack.c.b16 %v1197, %v1197
    %v1214 = vpack.c.b16 %v1198, %v1198
    %v1215 = vpack.c.b16 %v1199, %v1199
    %1232 = vst [vmem:[#allocation9] sm:$0xf] %v1200
    %1233 = vst [vmem:[#allocation9 + $0x4] sm:$0xf] %v1201
    %1234 = vst [vmem:[#allocation9 + $0x8] sm:$0xf] %v1202
    %1235 = vst [vmem:[#allocation9 + $0xc] sm:$0xf] %v1203
    %1236 = vst [vmem:[#allocation9 + $0x10] sm:$0xf] %v1204
    %1237 = vst [vmem:[#allocation9 + $0x14] sm:$0xf] %v1205
    %1238 = vst [vmem:[#allocation9 + $0x18] sm:$0xf] %v1206
    %1239 = vst [vmem:[#allocation9 + $0x1c] sm:$0xf] %v1207
    %1240 = vst [vmem:[#allocation9 + $0x20] sm:$0xf] %v1208
    %1241 = vst [vmem:[#allocation9 + $0x24] sm:$0xf] %v1209
    %1242 = vst [vmem:[#allocation9 + $0x28] sm:$0xf] %v1210
    %1243 = vst [vmem:[#allocation9 + $0x2c] sm:$0xf] %v1211
    %1244 = vst [vmem:[#allocation9 + $0x30] sm:$0xf] %v1212
    %1245 = vst [vmem:[#allocation9 + $0x34] sm:$0xf] %v1213
    %1246 = vst [vmem:[#allocation9 + $0x38] sm:$0xf] %v1214
    %1247 = vst [vmem:[#allocation9 + $0x3c] sm:$0xf] %v1215
    // Predicated region
    $region26: #{crop_recommendation_net.1} parent=1 // pred_check
      _
    $region27: #{crop_recommendation_net.1} parent=1 // pred_check_branch
      %1249 = sbr.rel (0) target = $region29
    $region28: #{crop_recommendation_net.1} parent=1 // pred_region
      %s1251 = ssub.s32 1024, 64
      %1252 = vsyncadd [#allocation5], %s1251
      %s1253 = sshll.u32 [#allocation9], 4
      %s1254 = int_to_ptr.vmem [resolvable:$true] %s1253
      %1259 = dma.vmem_to_hbm [thread:$0]  %s1254, 64, %s3, [#allocation5], 64, 64, 4
    $region29: #{crop_recommendation_net.1} parent=1 // pred_fallthru
      _
    // Predicated region
    $region30: #{crop_recommendation_net.1} parent=1 // pred_check
      _
    $region31: #{crop_recommendation_net.1} parent=1 // pred_check_branch
      %1261 = sbr.rel (0) target = $region33
    $region32: #{crop_recommendation_net.1} parent=1 // pred_region
      %1262 = dma.done [#allocation5], 1024
    $region33: #{crop_recommendation_net.1} parent=1 // pred_fallthru
      _
    %1263 = vsyncpa [#allocation4], 1
    %1264 = vsyncpa [#allocation7], 1
    %1265 = vsyncpa [#allocation5], 1

</llo_original>
